<compile_context>
chip_gen: v7x
topology: tpu7x:2x2x1
jax: 0.10.0
libtpu: 0.0.40
codegen_flags: <defaults>
</compile_context>

<pallas_src>
import functools
import math

import jax
import jax.numpy as jnp
from jax.experimental import pallas as pl
from jax.experimental.pallas import tpu as pltpu

_LANE = 128
_SUBLANE = 8


def _round_up(x: int, m: int) -> int:
    return ((x + m - 1) // m) * m


def _cdiv(a: int, b: int) -> int:
    return (a + b - 1) // b


def _make_head_kernel(out_size: int, min_var: float):
    def head_kernel(x_ref, w_ref, b_ref, out_ref, acc_ref):
        k = pl.program_id(1)

        @pl.when(k == 0)
        def _():
            acc_ref[...] = jnp.zeros_like(acc_ref)

        # bf16 x bf16 -> f32 accumulate on the MXU.
        acc_ref[...] += jnp.dot(
            x_ref[...], w_ref[...], preferred_element_type=jnp.float32
        )

        @pl.when(k == pl.num_programs(1) - 1)
        def _():
            # f32 epilogue (v5e VPU/EUP have no bf16 path).
            y = acc_ref[...] + b_ref[...]
            col = jax.lax.broadcasted_iota(jnp.int32, y.shape, 1)
            sig = jnp.sqrt(jax.nn.softplus(y) + jnp.float32(min_var))
            # cols [0, out_size): mu (identity); cols >= out_size: sigma branch.
            out_ref[...] = jnp.where(col >= out_size, sig, y).astype(out_ref.dtype)

    return head_kernel


def prepare_head_params(weight, bias, out_size, *, param_dtype=jnp.bfloat16,
                        k_tile=512):
    """One-time (init-time) parameter repack — NOT per forward call.

    weight: (2*out_size, input_size) PyTorch nn.Linear layout.
    bias:   (2*out_size,)

    Returns (w_fused (k_pad, n_fused) param_dtype, b_fused (1, n_fused) f32, meta)
    where columns [0, 2*out_size) hold [mu | sigma] weights and the remaining
    padding columns are zero (their garbage outputs are ignored downstream).
    """
    assert k_tile % _LANE == 0
    two_n, input_size = weight.shape
    assert two_n == 2 * out_size
    n_fused = _round_up(2 * out_size, _LANE)

    if input_size <= k_tile:
        tk, k_pad = input_size, input_size          # single K step, no padding
    else:
        tk = k_tile                                  # multiple of 128
        k_pad = _round_up(input_size, tk)

    w_t = weight.T.astype(param_dtype)               # (K, 2*out_size)
    w_fused = jnp.zeros((k_pad, n_fused), param_dtype)
    w_fused = w_fused.at[:input_size, :2 * out_size].set(w_t)

    b_fused = jnp.zeros((1, n_fused), jnp.float32)
    b_fused = b_fused.at[0, :2 * out_size].set(bias.astype(jnp.float32))

    meta = dict(out_size=int(out_size), n_fused=int(n_fused),
                input_size=int(input_size), k_pad=int(k_pad), tk=int(tk))
    return w_fused, b_fused, meta


def diag_gaussian_head(x, w_fused, b_fused, *, meta, min_var=0.0,
                       batch_tile=512,            # sweep up to 1024 on v6e
                       out_dtype=jnp.float32,     # pass bf16 if consumer allows
                       compute_dtype=jnp.bfloat16,
                       slice_outputs=True):
    """x: (B, input_size). Returns (mu, sig) each (B, out_size) in out_dtype,
    or the padded fused block (b_pad, n_fused) if slice_outputs=False
    (mu in [:, :out_size], sig in [:, out_size:2*out_size]) — preferred for
    consumers that can use the padded layout (avoids an unaligned slice copy).
    """
    out_size = meta["out_size"]
    n_fused = meta["n_fused"]
    k_pad = meta["k_pad"]
    tk = meta["tk"]
    B, K = x.shape
    assert K == meta["input_size"]
    assert w_fused.shape == (k_pad, n_fused)
    nk = k_pad // tk

    # ---- batch tiling: ceil-divide then round so padding is <= one sublane
    # group per tile; keep >= 2 grid steps when possible (v7x has 2 TCs). ----
    b8 = _round_up(B, _SUBLANE)
    tb_max = _round_up(max(batch_tile, _SUBLANE), _SUBLANE)
    min_tiles = 2 if b8 >= 2 * _SUBLANE else 1
    n_b_tiles = max(min_tiles, _cdiv(b8, tb_max))
    tb = _round_up(_cdiv(b8, n_b_tiles), _SUBLANE)
    n_b_tiles = _cdiv(b8, tb)
    b_pad = n_b_tiles * tb

    x = x.astype(compute_dtype)
    pad_b, pad_k = b_pad - B, k_pad - K
    if pad_b or pad_k:
        x = jnp.pad(x, ((0, pad_b), (0, pad_k)))     # zero rows/cols: no-op in matmul

    # ---- VMEM budget -> vmem_limit_bytes (default scoped limit is well below
    # physical: 16 MiB v5e / 32 MiB v6e+v7x). ----
    isz_x = jnp.dtype(compute_dtype).itemsize
    isz_w = jnp.dtype(w_fused.dtype).itemsize
    isz_o = jnp.dtype(out_dtype).itemsize
    w_bufs = 1 if nk == 1 else 2                      # constant weight -> single buffer
    budget = (2 * tb * tk * isz_x                     # x tile, double-buffered
              + w_bufs * tk * n_fused * isz_w         # weight tile(s)
              + n_fused * 4                           # bias (single buffer)
              + 2 * tb * n_fused * isz_o              # output tile, double-buffered
              + tb * n_fused * 4)                     # f32 accumulator scratch
    vmem_limit = min(max(int(budget * 1.3) + (1 << 20), 4 << 20), 64 << 20)

    w_spec_kwargs = {}
    if nk == 1:
        # Weight block never changes -> single buffer, halves its VMEM footprint.
        w_spec_kwargs["pipeline_mode"] = pl.Buffered(1)

    kernel = _make_head_kernel(out_size, float(min_var))

    fused = pl.pallas_call(
        kernel,
        out_shape=jax.ShapeDtypeStruct((b_pad, n_fused), out_dtype),
        grid=(n_b_tiles, nk),
        in_specs=[
            pl.BlockSpec((tb, tk), lambda i, k: (i, k)),                  # x streams
            pl.BlockSpec((tk, n_fused), lambda i, k: (k, 0),
                         **w_spec_kwargs),                                # weight
            pl.BlockSpec((1, n_fused), lambda i, k: (0, 0),
                         pipeline_mode=pl.Buffered(1)),                   # bias (const)
        ],
        out_specs=pl.BlockSpec((tb, n_fused), lambda i, k: (i, 0)),
        scratch_shapes=[pltpu.VMEM((tb, n_fused), jnp.float32)],
        compiler_params=pltpu.CompilerParams(
            dimension_semantics=("parallel", "arbitrary"),
            vmem_limit_bytes=vmem_limit,
        ),
    )(x, w_fused, b_fused)

    if not slice_outputs:
        return fused
    mu = fused[:B, :out_size]
    sig = fused[:B, out_size:2 * out_size]
    return mu, sig


def _reference(x, weight, bias, out_size, min_var=0.0):
    y = x @ weight.T + bias
    mu = y[:, :out_size]
    sig = jnp.sqrt(jax.nn.softplus(y[:, out_size:]) + min_var)
    return mu, sig


def _run_case(key, B, input_size, out_size, min_var):
    kx, kw, kb = jax.random.split(key, 3)
    x = jax.random.normal(kx, (B, input_size), dtype=jnp.float32)

    # Deterministic nn.Linear-style init: U(-1/sqrt(in), 1/sqrt(in)).
    bound = 1.0 / math.sqrt(input_size)
    weight = jax.random.uniform(kw, (2 * out_size, input_size),
                                minval=-bound, maxval=bound, dtype=jnp.float32)
    bias = jax.random.uniform(kb, (2 * out_size,),
                              minval=-bound, maxval=bound, dtype=jnp.float32)

    # Init-time repack (hoisted out of the forward hot path).
    w_fused, b_fused, meta = prepare_head_params(weight, bias, out_size)

    fwd = jax.jit(functools.partial(diag_gaussian_head, meta=meta, min_var=min_var))
    mu, sig = fwd(x, w_fused, b_fused)
    jax.block_until_ready((mu, sig))

    mu_ref, sig_ref = _reference(x, weight, bias, out_size, min_var)
    assert mu.shape == (B, out_size) and sig.shape == (B, out_size)
    # bf16 matmul operands with f32 accumulation -> loosen tolerance a bit.
    assert jnp.allclose(mu, mu_ref, atol=2e-2, rtol=2e-2), "mu mismatch"
    assert jnp.allclose(sig, sig_ref, atol=2e-2, rtol=2e-2), "sig mismatch"


if __name__ == "__main__":
    key = jax.random.PRNGKey(0)
    k1, k2 = jax.random.split(key)

    # Small canonical case (single K step, single batch tile).
    _run_case(k1, B=8, input_size=32, out_size=8, min_var=0.0)

    # Exercises the K-tiled accumulator path (input_size > 512) and the
    # >= 2-step batch grid (v7x dual-TC split), with nonzero min_var.
    _run_case(k2, B=24, input_size=640, out_size=3, min_var=0.1)

    print("KERNEL_OK")
</pallas_src>

<mosaic_0001>
module attributes {stable_mosaic.version = 11 : i64} {
  func.func @head_kernel(%arg0: i32, %arg1: i32, %arg2: memref<8x32xbf16, #tpu.memory_space<vmem>>, %arg3: memref<32x128xbf16, #tpu.memory_space<vmem>>, %arg4: memref<1x128xf32, #tpu.memory_space<vmem>>, %arg5: memref<8x128xf32, #tpu.memory_space<vmem>>, %arg6: memref<8x128xf32, #tpu.memory_space<vmem>>) attributes {dimension_semantics = [#tpu.dimension_semantics<parallel>, #tpu.dimension_semantics<arbitrary>], iteration_bounds = array<i64: 1, 1>, scalar_prefetch = 0 : i64, scratch_operands = 1 : i64, tpu.core_type = #tpu.core_type<tc>, window_params = [{transform_indices = @transform_0, window_bounds = array<i64: 8, 32>}, {pipeline_mode = #tpu.pipeline_mode<synchronous>, transform_indices = @transform_1, window_bounds = array<i64: 32, 128>}, {pipeline_mode = #tpu.pipeline_mode<synchronous>, transform_indices = @transform_2, window_bounds = array<i64: 1, 128>}, {transform_indices = @transform_3, window_bounds = array<i64: 8, 128>}]} {
    %c0_i32 = arith.constant 0 : i32
    %0 = arith.cmpi eq, %arg1, %c0_i32 : i32
    %1 = arith.extui %0 : i1 to i32
    %c0_i32_0 = arith.constant 0 : i32
    %2 = arith.cmpi ne, %1, %c0_i32_0 : i32
    scf.if %2 {
      %cst_10 = arith.constant 0.000000e+00 : f32
      %12 = vector.broadcast %cst_10 : f32 to vector<8x128xf32>
      %c0_11 = arith.constant 0 : index
      %c0_12 = arith.constant 0 : index
      %13 = vector.load %arg6[%c0_11, %c0_12] : memref<8x128xf32, #tpu.memory_space<vmem>>, vector<8x128xf32>
      tpu.vector_store %arg6[%c0_11, %c0_12], %12 {strides = array<i32>} : memref<8x128xf32, #tpu.memory_space<vmem>>, vector<8x128xf32>,
    } else {
    }
    %c0 = arith.constant 0 : index
    %c0_1 = arith.constant 0 : index
    %3 = vector.load %arg6[%c0, %c0_1] : memref<8x128xf32, #tpu.memory_space<vmem>>, vector<8x128xf32>
    %c0_2 = arith.constant 0 : index
    %c0_3 = arith.constant 0 : index
    %4 = vector.load %arg2[%c0_2, %c0_3] : memref<8x32xbf16, #tpu.memory_space<vmem>>, vector<8x32xbf16>
    %c0_4 = arith.constant 0 : index
    %c0_5 = arith.constant 0 : index
    %5 = vector.load %arg3[%c0_4, %c0_5] : memref<32x128xbf16, #tpu.memory_space<vmem>>, vector<32x128xbf16>
    %cst = arith.constant dense<0.000000e+00> : vector<8x128xf32>
    %6 = tpu.matmul %4, %5, %cst {dimension_numbers = #tpu.dot_dimension_numbers<[1], [0], [0], [1], [0, 0, 1, 1], [], []>} : vector<8x32xbf16>, vector<32x128xbf16>, vector<8x128xf32> -> vector<8x128xf32>
    %7 = arith.addf %3, %6 : vector<8x128xf32>
    %c0_6 = arith.constant 0 : index
    %c0_7 = arith.constant 0 : index
    %8 = vector.load %arg6[%c0_6, %c0_7] : memref<8x128xf32, #tpu.memory_space<vmem>>, vector<8x128xf32>
    tpu.vector_store %arg6[%c0_6, %c0_7], %7 {strides = array<i32>} : memref<8x128xf32, #tpu.memory_space<vmem>>, vector<8x128xf32>,
    %c0_i32_8 = arith.constant 0 : i32
    %9 = arith.cmpi eq, %arg1, %c0_i32_8 : i32
    %10 = arith.extui %9 : i1 to i32
    %c0_i32_9 = arith.constant 0 : i32
    %11 = arith.cmpi ne, %10, %c0_i32_9 : i32
    scf.if %11 {
      %c0_10 = arith.constant 0 : index
      %c0_11 = arith.constant 0 : index
      %12 = vector.load %arg6[%c0_10, %c0_11] : memref<8x128xf32, #tpu.memory_space<vmem>>, vector<8x128xf32>
      %c0_12 = arith.constant 0 : index
      %c0_13 = arith.constant 0 : index
      %13 = vector.load %arg4[%c0_12, %c0_13] : memref<1x128xf32, #tpu.memory_space<vmem>>, vector<1x128xf32>
      %14 = vector.broadcast %13 : vector<1x128xf32> to vector<8x128xf32>
      %15 = arith.addf %12, %14 : vector<8x128xf32>
      %16 = tpu.iota {dimensions = array<i32: 1>} : vector<8x128xi32>
      %cst_14 = arith.constant 0.000000e+00 : f32
      %17 = vector.broadcast %cst_14 : f32 to vector<8x128xf32>
      %18 = arith.maximumf %15, %17 : vector<8x128xf32>
      %19 = vector.broadcast %cst_14 : f32 to vector<8x128xf32>
      %20 = arith.subf %15, %19 : vector<8x128xf32>
      %21 = arith.cmpf one, %20, %20 : vector<8x128xf32>
      %22 = vector.broadcast %cst_14 : f32 to vector<8x128xf32>
      %23 = arith.addf %15, %22 : vector<8x128xf32>
      %24 = math.absf %20 : vector<8x128xf32>
      %cst_15 = arith.constant 0.000000e+00 : f32
      %25 = vector.broadcast %cst_15 : f32 to vector<8x128xf32>
      %26 = arith.subf %25, %24 : vector<8x128xf32>
      %27 = math.exp %26 : vector<8x128xf32>
      %28 = math.log1p %27 : vector<8x128xf32>
      %29 = arith.addf %18, %28 : vector<8x128xf32>
      %30 = arith.select %21, %23, %29 : vector<8x128xi1>, vector<8x128xf32>
      %cst_16 = arith.constant 0.000000e+00 : f32
      %31 = vector.broadcast %cst_16 : f32 to vector<8x128xf32>
      %32 = arith.addf %30, %31 : vector<8x128xf32>
      %33 = math.sqrt %32 : vector<8x128xf32>
      %c8_i32 = arith.constant 8 : i32
      %34 = vector.broadcast %c8_i32 : i32 to vector<8x128xi32>
      %35 = arith.cmpi sge, %16, %34 : vector<8x128xi32>
      %36 = arith.select %35, %33, %15 : vector<8x128xi1>, vector<8x128xf32>
      %c0_17 = arith.constant 0 : index
      %c0_18 = arith.constant 0 : index
      %37 = vector.load %arg5[%c0_17, %c0_18] : memref<8x128xf32, #tpu.memory_space<vmem>>, vector<8x128xf32>
      tpu.vector_store %arg5[%c0_17, %c0_18], %36 {strides = array<i32>} : memref<8x128xf32, #tpu.memory_space<vmem>>, vector<8x128xf32>,
    } else {
    }
    return
  }
  func.func @transform_0(%arg0: i32, %arg1: i32) -> (i32, i32) {
    %c0_i32 = arith.constant 0 : i32
    return %arg0, %arg1 : i32, i32
  }
  func.func @transform_1(%arg0: i32, %arg1: i32) -> (i32, i32) {
    %c0_i32 = arith.constant 0 : i32
    %c0_i32_0 = arith.constant 0 : i32
    return %arg1, %c0_i32 : i32, i32
  }
  func.func @transform_2(%arg0: i32, %arg1: i32) -> (i32, i32) {
    %c0_i32 = arith.constant 0 : i32
    %c0_i32_0 = arith.constant 0 : i32
    %c0_i32_1 = arith.constant 0 : i32
    return %c0_i32, %c0_i32_0 : i32, i32
  }
  func.func @transform_3(%arg0: i32, %arg1: i32) -> (i32, i32) {
    %c0_i32 = arith.constant 0 : i32
    %c0_i32_0 = arith.constant 0 : i32
    return %arg0, %c0_i32 : i32, i32
  }
}

</mosaic_0001>

<llo_original>
// kernel: diag_gaussian_head.1
$region0: #{diag_gaussian_head.1}
  #allocation0 [shape = 'u32[]', space=smem, size = 0x4, offset = 0x4, fixed_abs, tag = 'smem constant byte address 0x4 - core index']
  #allocation1 [shape = 'u32[144,128]{1,0:T(1,128)}', space=vmem, size = 0x12000, scoped, tag = 'internal scratch']
  #allocation2 [shape = 'f32[8,128]{1,0:T(8,128)}', space=vmem, size = 0x1000, scoped, tag = 'scratch operand']
  %s0 = inlined_call_operand.vmem [shape: bf16[8,32], index: 0, kind: input, shape index: {}]
  %s1 = inlined_call_operand.hbm [shape: bf16[32,128], index: 1, kind: input, shape index: {}]
  %s2 = inlined_call_operand.vmem [shape: f32[1,128], index: 2, kind: input, shape index: {}]
  %s3 = inlined_call_operand.vmem [shape: f32[8,128], index: 3, kind: output, shape index: {}]
  %s4 = sld [smem:[#allocation0]]
  $region34: #{diag_gaussian_head.1} parent=0
    _
  %s6 = ssub.s32 1, %s4
  %s7 = scalar_select 0, %s6, %s4
  $region1: #{diag_gaussian_head.1} parent=0
    #allocation3 [shape = 'u8[8192]{0}', space=vmem, size = 0x2000, scoped, tag = 'input window, operand 1, single buffered']
    #allocation4 [shape = 's32[1]{0}', space=sflag, size = 0x4, scoped, tag = 'scoped memory for diag_gaussian_head.1']
    %8 = vsyncpa [#allocation4], 0
    // Predicated region
    $region2: #{diag_gaussian_head.1} parent=1 // pred_check
      _
    $region3: #{diag_gaussian_head.1} parent=1 // pred_check_branch
      %10 = sbr.rel (0) target = $region5
    $region4: #{diag_gaussian_head.1} parent=1 // pred_region
      _
    $region5: #{diag_gaussian_head.1} parent=1 // pred_fallthru
      _
    // Predicated region
    $region6: #{diag_gaussian_head.1} parent=1 // pred_check
      _
    $region7: #{diag_gaussian_head.1} parent=1 // pred_check_branch
      %12 = sbr.rel (0) target = $region9
    $region8: #{diag_gaussian_head.1} parent=1 // pred_region
      %s14 = ssub.s32 256, 256
      %15 = vsyncadd [#allocation4], %s14
      %s16 = sshll.u32 [#allocation3], 4
      %s17 = int_to_ptr.vmem [resolvable:$true] %s16
      %22 = dma.hbm_to_vmem [thread:$0]  %s1, 256, %s17, [#allocation4], 64, 64, 4
    $region9: #{diag_gaussian_head.1} parent=1 // pred_fallthru
      _
    // Predicated region
    $region10: #{diag_gaussian_head.1} parent=1 // pred_check
      _
    $region11: #{diag_gaussian_head.1} parent=1 // pred_check_branch
      %24 = sbr.rel (0) target = $region13
    $region12: #{diag_gaussian_head.1} parent=1 // pred_region
      _
    $region13: #{diag_gaussian_head.1} parent=1 // pred_fallthru
      _
    // Predicated region
    $region14: #{diag_gaussian_head.1} parent=1 // pred_check
      _
    $region15: #{diag_gaussian_head.1} parent=1 // pred_check_branch
      %26 = sbr.rel (0) target = $region17
    $region16: #{diag_gaussian_head.1} parent=1 // pred_region
      %27 = dma.done [#allocation4], 256
    $region17: #{diag_gaussian_head.1} parent=1 // pred_fallthru
      _
    %p29 = scmp.eq.s32.totalorder 0, 0
    // Predicated region
    $region18: #{diag_gaussian_head.1} parent=1 // pred_check
      %p30 = pneg %p29
    $region19: #{diag_gaussian_head.1} parent=1 // pred_check_branch
      %32 = sbr.rel (%p30) target = $region21
    $region20: #{diag_gaussian_head.1} parent=1 // pred_region
      %33 = vst [vmem:[#allocation2] sm:$0xff] 0.0
    $region21: #{diag_gaussian_head.1} parent=1 // pred_fallthru
      _
    %v34 = vld [vmem:[#allocation2] sm:$0xff]
    %v35 = vld [vmem:[%s0] sm:$0xf]
    %v36 = vld [vmem:[#allocation3] sm:$0xf]
    %v37 = vld [vmem:[#allocation3 + $0x4] sm:$0xf]
    %v38 = vld [vmem:[#allocation3 + $0x8] sm:$0xf]
    %v39 = vld [vmem:[#allocation3 + $0xc] sm:$0xf]
    %v44 = vunpack.c.l.b16 %v36
    %v45 = vunpack.c.l.b16 %v37
    %v46 = vunpack.c.l.b16 %v38
    %v47 = vunpack.c.l.b16 %v39
    %v48 = vpack.c.b16 %v45, %v44
    %v49 = vpack.c.b16 %v47, %v46
    %vm52 = vcmask 261120
    %v54 = vsel %vm52, %v35, 0
    %56 = vmatprep.subr.bf16.mxu0 0
    %57 = vmatpush1.bf16.msra.mxu0 %v48
    %58 = vmatprep.subr.bf16.mxu0 0
    %59 = vmatpush1.bf16.msra.mxu0 %v49
    %60 = vmatprep.subr.bf16.mxu0 0
    %61 = vmatpush1.bf16.msra.mxu0 0
    %62 = vmatprep.subr.bf16.mxu0 0
    %63 = vmatpush1.bf16.msra.mxu0 0
    %64 = vmatprep.subr.bf16.mxu0 0
    %65 = vmatpush1.bf16.msra.mxu0 0
    %66 = vmatprep.subr.bf16.mxu0 0
    %67 = vmatpush1.bf16.msra.mxu0 0
    %68 = vmatprep.subr.bf16.mxu0 0
    %69 = vmatpush1.bf16.msra.mxu0 0
    %70 = vmatprep.subr.bf16.mxu0 0
    %71 = vmatpush1.bf16.msra.mxu0 0
    %72 = vmatprep.subr.bf16.mxu0 0
    %73 = vmatpush1.bf16.msra.mxu0 0
    %74 = vmatprep.subr.bf16.mxu0 0
    %75 = vmatpush1.bf16.msra.mxu0 0
    %76 = vmatprep.subr.bf16.mxu0 0
    %77 = vmatpush1.bf16.msra.mxu0 0
    %78 = vmatprep.subr.bf16.mxu0 0
    %79 = vmatpush1.bf16.msra.mxu0 0
    %80 = vmatprep.subr.bf16.mxu0 0
    %81 = vmatpush1.bf16.msra.mxu0 0
    %82 = vmatprep.subr.bf16.mxu0 0
    %83 = vmatpush1.bf16.msra.mxu0 0
    %84 = vmatprep.subr.bf16.mxu0 0
    %85 = vmatpush1.bf16.msra.mxu0 0
    %86 = vmatprep.subr.bf16.mxu0 0
    %87 = vmatpush1.bf16.msra.mxu0 0
    %88 = vmatprep.mubr.bf16.mxu0 0
    %89 = vmatmul.mubr.bf16.gmra.mrb[0].mxu0 %v54
    %v90 = vpop.f32.mrb[0].mxu0
    %v91 = vadd.f32 0.0, %v90
    %v92 = vpop.f32.mrb[0].mxu0
    %v93 = vpop.f32.mrb[0].mxu0
    %v94 = vpop.f32.mrb[0].mxu0
    %95 = vdwg.mxu0
    %v96 = vadd.f32 %v34, %v91
    %97 = vst [vmem:[#allocation2] sm:$0xff] %v96
    // Predicated region
    $region22: #{diag_gaussian_head.1} parent=1 // pred_check
      %p98 = pneg %p29
    $region23: #{diag_gaussian_head.1} parent=1 // pred_check_branch
      %100 = sbr.rel (%p98) target = $region25
    $region24: #{diag_gaussian_head.1} parent=1 // pred_region
      %v101 = vld [vmem:[#allocation2] sm:$0xff]
      %v102 = vld [vmem:[%s2] sm:$0x1]
      %v104 = vlaneseq
      %v105 = vshrl.u32 %v104, 7
      %v106 = vsub.s32 0, %v105
      %v107 = vrot.slane %v102, %v106
      %v109 = vadd.f32 %v101, %v107
      %v110 = vlaneseq
      %v111 = vand.u32 %v110, 127
      %v112 = vmax.f32 %v109, 0.0
      %vm113 = vcmp.ne.f32.partialorder %v109, %v109
      %v114 = vadd.f32 %v109, 0.0
      %v115 = vand.u32 2147483647, %v109
      %v116 = vsub.f32 0.0, %v115
      %v117 = vmul.f32 %v116, 1.442695
      %v118 = vpow.pop %v117
      %v119 = vadd.f32 %v118, 1.0
      %v120 = vlog2.pop %v119
      %v121 = vmul.f32 %v120, 0.6931472
      %v122 = vmul.f32 -0.5, %v118
      %v123 = vadd.f32 %v122, 1.0
      %v124 = vmul.f32 %v123, %v118
      %v125 = vand.u32 2147483647, %v118
      %vm126 = vcmp.lt.f32.partialorder %v125, 0.0004427343
      %v127 = vsel %vm126, %v124, %v121
      %v128 = vadd.f32 %v112, %v127
      %v129 = vsel %vm113, %v114, %v128
      %v130 = vadd.f32 %v129, 0.0
      %v131 = vrsqrt.pop %v130
      %v132 = vmul.f32 %v130, %v131
      %vm133 = vcmp.eq.f32.partialorder %v130, inf
      %v134 = vsel %vm133, %v130, %v132
      %vm135 = vcmp.eq.f32.partialorder %v130, 0.0
      %v136 = vand.u32 %v130, 2147483648
      %v137 = vsel %vm135, %v136, %v134
      %vm138 = vcmp.ge.s32.totalorder %v111, 8
      %v139 = vsel %vm138, %v137, %v109
      %140 = vst [vmem:[%s3] sm:$0xff] %v139
    $region25: #{diag_gaussian_head.1} parent=1 // pred_fallthru
      _
    // Predicated region
    $region26: #{diag_gaussian_head.1} parent=1 // pred_check
      _
    $region27: #{diag_gaussian_head.1} parent=1 // pred_check_branch
      %142 = sbr.rel (0) target = $region29
    $region28: #{diag_gaussian_head.1} parent=1 // pred_region
      _
    $region29: #{diag_gaussian_head.1} parent=1 // pred_fallthru
      _
    // Predicated region
    $region30: #{diag_gaussian_head.1} parent=1 // pred_check
      _
    $region31: #{diag_gaussian_head.1} parent=1 // pred_check_branch
      %144 = sbr.rel (0) target = $region33
    $region32: #{diag_gaussian_head.1} parent=1 // pred_region
      _
    $region33: #{diag_gaussian_head.1} parent=1 // pred_fallthru
      _
    %145 = vsyncpa [#allocation4], 1

</llo_original>
